<compile_context>
chip_gen: v7x
topology: tpu7x:2x2x1
jax: 0.10.0
libtpu: 0.0.40
codegen_flags: <defaults>
</compile_context>

<pallas_src>
import functools

import jax
import jax.numpy as jnp
from jax.experimental import pallas as pl
from jax.experimental.pallas import tpu as pltpu


def _multi_head_kernel(x_ref, w_ref, b_ref, norm_ref, probs_ref, *, H, A):
    # One fused matmul for all heads: (tb, D) @ (D, H*A) on the MXU, f32 acc.
    logits = jnp.dot(x_ref[...], w_ref[...],
                     preferred_element_type=jnp.float32) + b_ref[...]   # (tb, H*A) f32

    # Per-head softmax normalization over each A-wide lane slice.  H is a small
    # static constant, so a Python unroll over static lane slices is cheap
    # (VPU/XLU/EUP work only).  Results go straight to static sub-slices of the
    # output refs — no concatenate relayout, minimal live vregs.
    for h in range(H):
        lg = logits[:, h * A:(h + 1) * A]                   # (tb, A)
        m = jnp.max(lg, axis=-1, keepdims=True)
        shifted = lg - m
        e = jnp.exp(shifted)
        s = jnp.sum(e, axis=-1, keepdims=True)
        norm_ref[:, h * A:(h + 1) * A] = shifted - jnp.log(s)        # logits - logsumexp
        # Exact reciprocal keeps probs bit-faithful to softmax; flip to
        # approx=True (EUP vrcp) if ~1e-4 relative error is acceptable.
        probs_ref[:, h * A:(h + 1) * A] = e * pl.reciprocal(s, approx=False)


def _choose_tile(B, D, HA, in_itemsize):
    """Pick (tile_B, padded_B).

    * B <= 8: use the full batch as one block (full-extent blocks are exempt
      from the (8,128) divisibility rule) — single grid step, zero overhead.
    * Otherwise: largest sublane-aligned tile that (a) keeps the estimated
      double-buffered VMEM footprint under a conservative budget (safe for
      v7x's 32 MiB scoped / 64 MiB physical VMEM) and (b) leaves >= 2 grid
      steps when B >= 16 so both v7x TensorCores get work.  Awkward batch
      sizes are padded up to a tile multiple instead of degrading to tiny
      tiles (each extra grid step costs ~0.35 us of pipeline overhead).
    """
    if B <= 8:
        return B, B

    budget = 8 * 1024 * 1024          # headroom vs. 32 MiB scoped VMEM on v7x
    max_tb = max(8, (B + 1) // 2)     # guarantee >= 2 grid steps for B >= 16
    for tb in (1024, 512, 256, 128, 64, 32, 16, 8):
        if tb > max_tb:
            continue
        vmem_est = (2 * tb * D * in_itemsize      # x, double-buffered
                    + 2 * D * HA * in_itemsize    # weights, double-buffered
                    + 2 * HA * 4                  # bias
                    + 2 * 2 * tb * HA * 4)        # 2 f32 outputs, double-buffered
        if vmem_est <= budget:
            b_pad = -(-B // tb) * tb
            return tb, b_pad
    return 8, -(-B // 8) * 8


def pack_params(W, b, *, input_dtype=jnp.bfloat16):
    """One-time (init-time) repack of per-head Linear params.

    W: (H, D, A), b: (H, 1, A).  Returns W2: (D, H*A) in `input_dtype`
    (column h*A + a of W2 is W[h, :, a]) and b2: (1, H*A) kept in f32
    (bias is added after the f32-accumulated matmul).
    Hoisted out of the per-forward path so the weight tensor is not
    re-read/re-written from HBM on every call.
    """
    H, D, A = W.shape
    W2 = jnp.transpose(W, (1, 0, 2)).reshape(D, H * A).astype(input_dtype)
    b2 = b.reshape(1, H * A).astype(jnp.float32)
    return W2, b2


def multi_head_categorical_forward(x, W2, b2, action_num):
    """x: (B, D); W2: (D, H*A) packed; b2: (1, H*A) f32; action_num = H.

    Returns (norm_logits, probs), each (B, H, A) f32 — the per-head
    Categorical state (Categorical.logits, Categorical.probs).  The (B, H, A)
    view is a free reshape of the kernel's lane-dense (B, H*A) output slab;
    consumers needing the torch module's head-concatenated views can reshape
    or transpose cheaply downstream.
    """
    B, D = x.shape
    D2, HA = W2.shape
    assert D == D2
    H = action_num
    A = HA // H
    assert H * A == HA

    in_dtype = W2.dtype
    if x.dtype != in_dtype:
        x = x.astype(in_dtype)          # bf16 (or f32) matmul operands

    tb, B_pad = _choose_tile(B, D, HA, jnp.dtype(in_dtype).itemsize)
    if B_pad != B:
        x = jnp.pad(x, ((0, B_pad - B), (0, 0)))

    grid = (B_pad // tb,)
    out_sds = jax.ShapeDtypeStruct((B_pad, HA), jnp.float32)

    norm2, probs2 = pl.pallas_call(
        functools.partial(_multi_head_kernel, H=H, A=A),
        out_shape=(out_sds, out_sds),
        grid_spec=pltpu.PrefetchScalarGridSpec(
            num_scalar_prefetch=0,
            grid=grid,
            in_specs=[
                pl.BlockSpec((tb, D), lambda i: (i, 0)),    # batch tile of inputs
                pl.BlockSpec((D, HA), lambda i: (0, 0)),    # all head weights, shared
                pl.BlockSpec((1, HA), lambda i: (0, 0)),    # all head biases, shared
            ],
            out_specs=[
                pl.BlockSpec((tb, HA), lambda i: (i, 0)),   # norm_logits slab
                pl.BlockSpec((tb, HA), lambda i: (i, 0)),   # probs slab
            ],
        ),
        compiler_params=pltpu.CompilerParams(
            dimension_semantics=("parallel",),
            vmem_limit_bytes=32 * 1024 * 1024,
        ),
    )(x, W2, b2)

    if B_pad != B:
        norm2 = norm2[:B]
        probs2 = probs2[:B]

    # Free reshape (no transpose pass): head-major per-row layout (B, H, A).
    return norm2.reshape(B, H, A), probs2.reshape(B, H, A)


def _reference(x, W, b):
    logits = jnp.einsum("bd,hda->bha", x, W) + b[:, 0, :]         # (B, H, A)
    lse = jax.scipy.special.logsumexp(logits, axis=-1, keepdims=True)
    return logits - lse, jax.nn.softmax(logits, axis=-1)


if __name__ == "__main__":
    # Small shapes consistent with the module: num_inputs=32, action_num=3, action_dim=8.
    B, D, A, H = 2, 32, 8, 3

    key = jax.random.PRNGKey(0)
    kx, kw = jax.random.split(key)

    x = jax.random.normal(kx, (B, D), dtype=jnp.float32)
    # Deterministic synthetic params: small-gain weights, zero bias, mirroring
    # init_(nn.Linear(...)) with orthogonal_(gain=0.01) / constant_(0).
    W = 0.01 * jax.random.normal(kw, (H, D, A), dtype=jnp.float32)
    b = jnp.zeros((H, 1, A), dtype=jnp.float32)

    ref_norm, ref_probs = _reference(x, W, b)

    # f32-operand path: bit-faithful check.
    W2_f32, b2_f32 = pack_params(W, b, input_dtype=jnp.float32)
    norm32, probs32 = multi_head_categorical_forward(x, W2_f32, b2_f32, H)
    jax.block_until_ready((norm32, probs32))
    assert jnp.allclose(norm32, ref_norm, atol=1e-5, rtol=1e-5)
    assert jnp.allclose(probs32, ref_probs, atol=1e-5, rtol=1e-5)

    # bf16-operand path (halved x/W DMA bytes; f32 accumulation + softmax):
    # looser tolerance since the matmul inputs lose mantissa bits.
    W2_bf16, b2_bf16 = pack_params(W, b, input_dtype=jnp.bfloat16)
    norm16, probs16 = multi_head_categorical_forward(x, W2_bf16, b2_bf16, H)
    jax.block_until_ready((norm16, probs16))
    assert jnp.allclose(norm16, ref_norm, atol=5e-2, rtol=5e-2)
    assert jnp.allclose(probs16, ref_probs, atol=5e-2, rtol=5e-2)

    print("KERNEL_OK")
</pallas_src>

<mosaic_0001>
module attributes {stable_mosaic.version = 11 : i64} {
  func.func @_multi_head_kernel(%arg0: i32, %arg1: memref<2x32xf32, #tpu.memory_space<vmem>>, %arg2: memref<32x24xf32, #tpu.memory_space<vmem>>, %arg3: memref<1x24xf32, #tpu.memory_space<vmem>>, %arg4: memref<2x24xf32, #tpu.memory_space<vmem>>, %arg5: memref<2x24xf32, #tpu.memory_space<vmem>>) attributes {dimension_semantics = [#tpu.dimension_semantics<parallel>], iteration_bounds = array<i64: 1>, scalar_prefetch = 0 : i64, scratch_operands = 0 : i64, tpu.core_type = #tpu.core_type<tc>, window_params = [{transform_indices = @transform_0, window_bounds = array<i64: 2, 32>}, {pipeline_mode = #tpu.pipeline_mode<synchronous>, transform_indices = @transform_1, window_bounds = array<i64: 32, 24>}, {pipeline_mode = #tpu.pipeline_mode<synchronous>, transform_indices = @transform_2, window_bounds = array<i64: 1, 24>}, {transform_indices = @transform_3, window_bounds = array<i64: 2, 24>}, {transform_indices = @transform_4, window_bounds = array<i64: 2, 24>}]} {
    %c0 = arith.constant 0 : index
    %c0_0 = arith.constant 0 : index
    %0 = vector.load %arg1[%c0, %c0_0] : memref<2x32xf32, #tpu.memory_space<vmem>>, vector<2x32xf32>
    %c0_1 = arith.constant 0 : index
    %c0_2 = arith.constant 0 : index
    %1 = vector.load %arg2[%c0_1, %c0_2] : memref<32x24xf32, #tpu.memory_space<vmem>>, vector<32x24xf32>
    %cst = arith.constant dense<0.000000e+00> : vector<2x24xf32>
    %2 = tpu.matmul %0, %1, %cst {dimension_numbers = #tpu.dot_dimension_numbers<[1], [0], [0], [1], [0, 0, 1, 1], [], []>} : vector<2x32xf32>, vector<32x24xf32>, vector<2x24xf32> -> vector<2x24xf32>
    %c0_3 = arith.constant 0 : index
    %c0_4 = arith.constant 0 : index
    %3 = vector.load %arg3[%c0_3, %c0_4] : memref<1x24xf32, #tpu.memory_space<vmem>>, vector<1x24xf32>
    %4 = vector.broadcast %3 : vector<1x24xf32> to vector<2x24xf32>
    %5 = arith.addf %2, %4 : vector<2x24xf32>
    %6 = vector.extract_strided_slice %5 {offsets = [0, 0], sizes = [2, 8], strides = [1, 1]} : vector<2x24xf32> to vector<2x8xf32>
    %cst_5 = arith.constant dense<0xFF800000> : vector<2xf32>
    %7 = vector.multi_reduction <maximumf>, %6, %cst_5 [1] : vector<2x8xf32> to vector<2xf32>
    %8 = vector.shape_cast %7 : vector<2xf32> to vector<2x1xf32>
    %9 = vector.broadcast %8 : vector<2x1xf32> to vector<2x8xf32>
    %10 = arith.subf %6, %9 : vector<2x8xf32>
    %11 = math.exp %10 : vector<2x8xf32>
    %cst_6 = arith.constant dense<0.000000e+00> : vector<2xf32>
    %12 = vector.multi_reduction <add>, %11, %cst_6 [1] : vector<2x8xf32> to vector<2xf32>
    %13 = vector.shape_cast %12 : vector<2xf32> to vector<2x1xf32>
    %14 = math.log %13 : vector<2x1xf32>
    %15 = vector.broadcast %14 : vector<2x1xf32> to vector<2x8xf32>
    %16 = arith.subf %10, %15 : vector<2x8xf32>
    %c0_7 = arith.constant 0 : index
    %c0_8 = arith.constant 0 : index
    %17 = vector.load %arg4[%c0_7, %c0_8] : memref<2x24xf32, #tpu.memory_space<vmem>>, vector<2x8xf32>
    tpu.vector_store %arg4[%c0_7, %c0_8], %16 {strides = array<i32>} : memref<2x24xf32, #tpu.memory_space<vmem>>, vector<2x8xf32>,
    %18 = tpu.reciprocal %13 : vector<2x1xf32> -> vector<2x1xf32>
    %19 = vector.broadcast %18 : vector<2x1xf32> to vector<2x8xf32>
    %20 = arith.mulf %11, %19 : vector<2x8xf32>
    %c0_9 = arith.constant 0 : index
    %c0_10 = arith.constant 0 : index
    %21 = vector.load %arg5[%c0_9, %c0_10] : memref<2x24xf32, #tpu.memory_space<vmem>>, vector<2x8xf32>
    tpu.vector_store %arg5[%c0_9, %c0_10], %20 {strides = array<i32>} : memref<2x24xf32, #tpu.memory_space<vmem>>, vector<2x8xf32>,
    %22 = vector.extract_strided_slice %5 {offsets = [0, 8], sizes = [2, 8], strides = [1, 1]} : vector<2x24xf32> to vector<2x8xf32>
    %cst_11 = arith.constant dense<0xFF800000> : vector<2xf32>
    %23 = vector.multi_reduction <maximumf>, %22, %cst_11 [1] : vector<2x8xf32> to vector<2xf32>
    %24 = vector.shape_cast %23 : vector<2xf32> to vector<2x1xf32>
    %25 = vector.broadcast %24 : vector<2x1xf32> to vector<2x8xf32>
    %26 = arith.subf %22, %25 : vector<2x8xf32>
    %27 = math.exp %26 : vector<2x8xf32>
    %cst_12 = arith.constant dense<0.000000e+00> : vector<2xf32>
    %28 = vector.multi_reduction <add>, %27, %cst_12 [1] : vector<2x8xf32> to vector<2xf32>
    %29 = vector.shape_cast %28 : vector<2xf32> to vector<2x1xf32>
    %30 = math.log %29 : vector<2x1xf32>
    %31 = vector.broadcast %30 : vector<2x1xf32> to vector<2x8xf32>
    %32 = arith.subf %26, %31 : vector<2x8xf32>
    %c0_13 = arith.constant 0 : index
    %c8 = arith.constant 8 : index
    %33 = vector.load %arg4[%c0_13, %c8] : memref<2x24xf32, #tpu.memory_space<vmem>>, vector<2x8xf32>
    tpu.vector_store %arg4[%c0_13, %c8], %32 {strides = array<i32>} : memref<2x24xf32, #tpu.memory_space<vmem>>, vector<2x8xf32>,
    %34 = tpu.reciprocal %29 : vector<2x1xf32> -> vector<2x1xf32>
    %35 = vector.broadcast %34 : vector<2x1xf32> to vector<2x8xf32>
    %36 = arith.mulf %27, %35 : vector<2x8xf32>
    %c0_14 = arith.constant 0 : index
    %c8_15 = arith.constant 8 : index
    %37 = vector.load %arg5[%c0_14, %c8_15] : memref<2x24xf32, #tpu.memory_space<vmem>>, vector<2x8xf32>
    tpu.vector_store %arg5[%c0_14, %c8_15], %36 {strides = array<i32>} : memref<2x24xf32, #tpu.memory_space<vmem>>, vector<2x8xf32>,
    %38 = vector.extract_strided_slice %5 {offsets = [0, 16], sizes = [2, 8], strides = [1, 1]} : vector<2x24xf32> to vector<2x8xf32>
    %cst_16 = arith.constant dense<0xFF800000> : vector<2xf32>
    %39 = vector.multi_reduction <maximumf>, %38, %cst_16 [1] : vector<2x8xf32> to vector<2xf32>
    %40 = vector.shape_cast %39 : vector<2xf32> to vector<2x1xf32>
    %41 = vector.broadcast %40 : vector<2x1xf32> to vector<2x8xf32>
    %42 = arith.subf %38, %41 : vector<2x8xf32>
    %43 = math.exp %42 : vector<2x8xf32>
    %cst_17 = arith.constant dense<0.000000e+00> : vector<2xf32>
    %44 = vector.multi_reduction <add>, %43, %cst_17 [1] : vector<2x8xf32> to vector<2xf32>
    %45 = vector.shape_cast %44 : vector<2xf32> to vector<2x1xf32>
    %46 = math.log %45 : vector<2x1xf32>
    %47 = vector.broadcast %46 : vector<2x1xf32> to vector<2x8xf32>
    %48 = arith.subf %42, %47 : vector<2x8xf32>
    %c0_18 = arith.constant 0 : index
    %c16 = arith.constant 16 : index
    %49 = vector.load %arg4[%c0_18, %c16] : memref<2x24xf32, #tpu.memory_space<vmem>>, vector<2x8xf32>
    tpu.vector_store %arg4[%c0_18, %c16], %48 {strides = array<i32>} : memref<2x24xf32, #tpu.memory_space<vmem>>, vector<2x8xf32>,
    %50 = tpu.reciprocal %45 : vector<2x1xf32> -> vector<2x1xf32>
    %51 = vector.broadcast %50 : vector<2x1xf32> to vector<2x8xf32>
    %52 = arith.mulf %43, %51 : vector<2x8xf32>
    %c0_19 = arith.constant 0 : index
    %c16_20 = arith.constant 16 : index
    %53 = vector.load %arg5[%c0_19, %c16_20] : memref<2x24xf32, #tpu.memory_space<vmem>>, vector<2x8xf32>
    tpu.vector_store %arg5[%c0_19, %c16_20], %52 {strides = array<i32>} : memref<2x24xf32, #tpu.memory_space<vmem>>, vector<2x8xf32>,
    return
  }
  func.func @transform_0(%arg0: i32) -> (i32, i32) {
    %c0_i32 = arith.constant 0 : i32
    %c0_i32_0 = arith.constant 0 : i32
    return %arg0, %c0_i32 : i32, i32
  }
  func.func @transform_1(%arg0: i32) -> (i32, i32) {
    %c0_i32 = arith.constant 0 : i32
    %c0_i32_0 = arith.constant 0 : i32
    %c0_i32_1 = arith.constant 0 : i32
    return %c0_i32, %c0_i32_0 : i32, i32
  }
  func.func @transform_2(%arg0: i32) -> (i32, i32) {
    %c0_i32 = arith.constant 0 : i32
    %c0_i32_0 = arith.constant 0 : i32
    %c0_i32_1 = arith.constant 0 : i32
    return %c0_i32, %c0_i32_0 : i32, i32
  }
  func.func @transform_3(%arg0: i32) -> (i32, i32) {
    %c0_i32 = arith.constant 0 : i32
    %c0_i32_0 = arith.constant 0 : i32
    return %arg0, %c0_i32 : i32, i32
  }
  func.func @transform_4(%arg0: i32) -> (i32, i32) {
    %c0_i32 = arith.constant 0 : i32
    %c0_i32_0 = arith.constant 0 : i32
    return %arg0, %c0_i32 : i32, i32
  }
}

</mosaic_0001>

<llo_original>
// kernel: tpu_custom_call.1
$region0: #{tpu_custom_call.1}
  #allocation0 [shape = 'u32[]', space=smem, size = 0x4, offset = 0x4, fixed_abs, tag = 'smem constant byte address 0x4 - core index']
  #allocation1 [shape = 'u32[144,128]{1,0:T(1,128)}', space=vmem, size = 0x12000, scoped, tag = 'internal scratch']
  %s0 = inlined_call_operand.vmem [shape: f32[2,32], index: 0, kind: input, shape index: {}]
  %s1 = inlined_call_operand.vmem [shape: f32[32,24], index: 1, kind: input, shape index: {}]
  %s2 = inlined_call_operand.vmem [shape: f32[1,24], index: 2, kind: input, shape index: {}]
  %s3 = inlined_call_operand.hbm [shape: f32[2,24], index: 3, kind: output, shape index: {0}]
  %s4 = inlined_call_operand.hbm [shape: f32[2,24], index: 4, kind: output, shape index: {1}]
  %5 = xla_tuple %s3, %s4
  %s6 = sld [smem:[#allocation0]]
  $region30: #{tpu_custom_call.1} parent=0
    _
  %s8 = ssub.s32 1, %s6
  %s9 = scalar_select 0, %s8, %s6
  $region1: #{tpu_custom_call.1} parent=0
    #allocation2 [shape = 'u8[1024]{0}', space=vmem, size = 0x400, scoped, tag = 'output window, operand 0, single buffered']
    #allocation3 [shape = 's32[1]{0}', space=sflag, size = 0x4, scoped, tag = 'scoped memory for tpu_custom_call.1']
    #allocation4 [shape = 'u8[1024]{0}', space=vmem, size = 0x400, scoped, tag = 'output window, operand 1, single buffered']
    #allocation5 [shape = 's32[1]{0}', space=sflag, size = 0x4, scoped, tag = 'scoped memory for tpu_custom_call.1']
    %10 = vsyncpa [#allocation3], 0
    %11 = vsyncpa [#allocation5], 0
    // Predicated region
    $region2: #{tpu_custom_call.1} parent=1 // pred_check
      _
    $region3: #{tpu_custom_call.1} parent=1 // pred_check_branch
      %13 = sbr.rel (0) target = $region5
    $region4: #{tpu_custom_call.1} parent=1 // pred_region
      _
    $region5: #{tpu_custom_call.1} parent=1 // pred_fallthru
      _
    // Predicated region
    $region6: #{tpu_custom_call.1} parent=1 // pred_check
      _
    $region7: #{tpu_custom_call.1} parent=1 // pred_check_branch
      %15 = sbr.rel (0) target = $region9
    $region8: #{tpu_custom_call.1} parent=1 // pred_region
      _
    $region9: #{tpu_custom_call.1} parent=1 // pred_fallthru
      _
    // Predicated region
    $region10: #{tpu_custom_call.1} parent=1 // pred_check
      _
    $region11: #{tpu_custom_call.1} parent=1 // pred_check_branch
      %17 = sbr.rel (0) target = $region13
    $region12: #{tpu_custom_call.1} parent=1 // pred_region
      _
    $region13: #{tpu_custom_call.1} parent=1 // pred_fallthru
      _
    %v18 = vld [vmem:[%s0] sm:$0x3]
    %v19 = vld [vmem:[%s1] sm:$0xff]
    %v20 = vld [vmem:[%s1 + $0x8] sm:$0xff]
    %v21 = vld [vmem:[%s1 + $0x10] sm:$0xff]
    %v22 = vld [vmem:[%s1 + $0x18] sm:$0xff]
    %v23 = vld [vmem:[%s2] sm:$0x1]
    %v25 = vlaneseq
    %v26 = vshrl.u32 %v25, 7
    %v27 = vsub.s32 0, %v26
    %v28 = vrot.slane %v23, %v27
    %vm30 = vcmask 261120
    %v32 = vsel %vm30, %v18, 0
    %34 = vmatprep.subr.mxu0 0.0
    %35 = vmatpush1.msra.mxu0 %v19
    %36 = vmatprep.subr.mxu0 0.0
    %37 = vmatpush1.msra.mxu0 %v20
    %38 = vmatprep.subr.mxu0 0.0
    %39 = vmatpush1.msra.mxu0 %v21
    %40 = vmatprep.subr.mxu0 0.0
    %41 = vmatpush1.msra.mxu0 %v22
    %42 = vmatprep.subr.mxu0 0.0
    %43 = vmatpush1.msra.mxu0 0.0
    %44 = vmatprep.subr.mxu0 0.0
    %45 = vmatpush1.msra.mxu0 0.0
    %46 = vmatprep.subr.mxu0 0.0
    %47 = vmatpush1.msra.mxu0 0.0
    %48 = vmatprep.subr.mxu0 0.0
    %49 = vmatpush1.msra.mxu0 0.0
    %50 = vmatprep.subr.mxu0 0.0
    %51 = vmatpush1.msra.mxu0 0.0
    %52 = vmatprep.subr.mxu0 0.0
    %53 = vmatpush1.msra.mxu0 0.0
    %54 = vmatprep.subr.mxu0 0.0
    %55 = vmatpush1.msra.mxu0 0.0
    %56 = vmatprep.subr.mxu0 0.0
    %57 = vmatpush1.msra.mxu0 0.0
    %58 = vmatprep.subr.mxu0 0.0
    %59 = vmatpush1.msra.mxu0 0.0
    %60 = vmatprep.subr.mxu0 0.0
    %61 = vmatpush1.msra.mxu0 0.0
    %62 = vmatprep.subr.mxu0 0.0
    %63 = vmatpush1.msra.mxu0 0.0
    %64 = vmatprep.subr.mxu0 0.0
    %65 = vmatpush1.msra.mxu0 0.0
    %66 = vmatprep.subr.mxu0 0.0
    %67 = vmatpush1.msra.mxu0 0.0
    %68 = vmatprep.subr.mxu0 0.0
    %69 = vmatpush1.msra.mxu0 0.0
    %70 = vmatprep.subr.mxu0 0.0
    %71 = vmatpush1.msra.mxu0 0.0
    %72 = vmatprep.subr.mxu0 0.0
    %73 = vmatpush1.msra.mxu0 0.0
    %74 = vmatprep.subr.mxu0 0.0
    %75 = vmatpush1.msra.mxu0 0.0
    %76 = vmatprep.subr.mxu0 0.0
    %77 = vmatpush1.msra.mxu0 0.0
    %78 = vmatprep.subr.mxu0 0.0
    %79 = vmatpush1.msra.mxu0 0.0
    %80 = vmatprep.subr.mxu0 0.0
    %81 = vmatpush1.msra.mxu0 0.0
    %82 = vmatprep.subr.mxu0 0.0
    %83 = vmatpush1.msra.mxu0 0.0
    %84 = vmatprep.subr.mxu0 0.0
    %85 = vmatpush1.msra.mxu0 0.0
    %86 = vmatprep.subr.mxu0 0.0
    %87 = vmatpush1.msra.mxu0 0.0
    %88 = vmatprep.subr.mxu0 0.0
    %89 = vmatpush1.msra.mxu0 0.0
    %90 = vmatprep.subr.mxu0 0.0
    %91 = vmatpush1.msra.mxu0 0.0
    %92 = vmatprep.subr.mxu0 0.0
    %93 = vmatpush1.msra.mxu0 0.0
    %94 = vmatprep.subr.mxu0 0.0
    %95 = vmatpush1.msra.mxu0 0.0
    %96 = vmatprep.subr.mxu0 0.0
    %97 = vmatpush1.msra.mxu0 0.0
    %98 = vmatprep.mubr.f32.mxu0 0.0
    %99 = vmatmul.mubr.f32.gmra.mrb[0].mxu0 %v32
    %v100 = vpop.f32.mrb[0].mxu0
    %v101 = vadd.f32 %v28, %v100
    %v102 = vpop.f32.mrb[0].mxu0
    %103 = vdwg.mxu0
    %vm104 = vcmask 58368
    %v105 = vsel %vm104, %v101, -inf
    %106 = vmax.xlane.f32.xlu0 %v105
    %v107 = vpop.xlane.xlu0 %106
    %v108 = vsub.f32 %v101, %v107
    %v109 = vmul.f32 %v108, 1.442695
    %v110 = vpow.pop %v109
    %v111 = vsel %vm104, %v110, 0.0
    %112 = vadd.xlane.f32.xlu0 %v111
    %v113 = vpop.xlane.xlu0 %112
    %v114 = vlog2.pop %v113
    %v115 = vmul.f32 %v114, 0.6931472
    %v116 = vsub.f32 %v108, %v115
    %117 = vst.msk [vmem:[#allocation2] sm:$0x3] %vm104, %v116
    %v118 = vrcp.pop %v113
    %v119 = vmul.f32 %v110, %v118
    %120 = vst.msk [vmem:[#allocation4] sm:$0x3] %vm104, %v119
    %vm121 = vcmask 123968
    %v122 = vsel %vm121, %v101, -inf
    %123 = vmax.xlane.f32.xlu0 %v122
    %v124 = vpop.xlane.xlu0 %123
    %v125 = vsub.f32 %v101, %v124
    %v126 = vmul.f32 %v125, 1.442695
    %v127 = vpow.pop %v126
    %129 = vrot.lane.b32.xlu0 %v127, 120
    %v130 = vpop.permute.xlu0 %129
    %v132 = vsel %vm104, %v130, 0.0
    %133 = vadd.xlane.f32.xlu0 %v132
    %v134 = vpop.xlane.xlu0 %133
    %v135 = vlog2.pop %v134
    %v136 = vmul.f32 %v135, 0.6931472
    %v137 = vsub.f32 %v125, %v136
    %138 = vst.msk [vmem:[#allocation2] sm:$0x3] %vm121, %v137
    %v139 = vrcp.pop %v134
    %v140 = vmul.f32 %v127, %v139
    %141 = vst.msk [vmem:[#allocation4] sm:$0x3] %vm121, %v140
    %vm142 = vcmask 189568
    %v143 = vsel %vm142, %v101, -inf
    %144 = vmax.xlane.f32.xlu0 %v143
    %v145 = vpop.xlane.xlu0 %144
    %v146 = vsub.f32 %v101, %v145
    %v147 = vmul.f32 %v146, 1.442695
    %v148 = vpow.pop %v147
    %150 = vrot.lane.b32.xlu0 %v148, 112
    %v151 = vpop.permute.xlu0 %150
    %v153 = vsel %vm104, %v151, 0.0
    %154 = vadd.xlane.f32.xlu0 %v153
    %v155 = vpop.xlane.xlu0 %154
    %v156 = vlog2.pop %v155
    %v157 = vmul.f32 %v156, 0.6931472
    %v158 = vsub.f32 %v146, %v157
    %159 = vst.msk [vmem:[#allocation2] sm:$0x3] %vm142, %v158
    %v160 = vrcp.pop %v155
    %v161 = vmul.f32 %v148, %v160
    %162 = vst.msk [vmem:[#allocation4] sm:$0x3] %vm142, %v161
    // Predicated region
    $region14: #{tpu_custom_call.1} parent=1 // pred_check
      _
    $region15: #{tpu_custom_call.1} parent=1 // pred_check_branch
      %164 = sbr.rel (0) target = $region17
    $region16: #{tpu_custom_call.1} parent=1 // pred_region
      %s166 = ssub.s32 32, 32
      %167 = vsyncadd [#allocation3], %s166
      %s169 = sshll.u32 [#allocation2], 4
      %s170 = int_to_ptr.vmem [resolvable:$true] %s169
      %172 = dma.vmem_to_hbm [thread:$0]  %s170, 32, %s3, [#allocation3]
    $region17: #{tpu_custom_call.1} parent=1 // pred_fallthru
      _
    // Predicated region
    $region18: #{tpu_custom_call.1} parent=1 // pred_check
      _
    $region19: #{tpu_custom_call.1} parent=1 // pred_check_branch
      %174 = sbr.rel (0) target = $region21
    $region20: #{tpu_custom_call.1} parent=1 // pred_region
      %s176 = ssub.s32 32, 32
      %177 = vsyncadd [#allocation5], %s176
      %s179 = sshll.u32 [#allocation4], 4
      %s180 = int_to_ptr.vmem [resolvable:$true] %s179
      %182 = dma.vmem_to_hbm [thread:$0]  %s180, 32, %s4, [#allocation5]
    $region21: #{tpu_custom_call.1} parent=1 // pred_fallthru
      _
    // Predicated region
    $region22: #{tpu_custom_call.1} parent=1 // pred_check
      _
    $region23: #{tpu_custom_call.1} parent=1 // pred_check_branch
      %184 = sbr.rel (0) target = $region25
    $region24: #{tpu_custom_call.1} parent=1 // pred_region
      %185 = dma.done [#allocation3], 32
    $region25: #{tpu_custom_call.1} parent=1 // pred_fallthru
      _
    // Predicated region
    $region26: #{tpu_custom_call.1} parent=1 // pred_check
      _
    $region27: #{tpu_custom_call.1} parent=1 // pred_check_branch
      %187 = sbr.rel (0) target = $region29
    $region28: #{tpu_custom_call.1} parent=1 // pred_region
      %188 = dma.done [#allocation5], 32
    $region29: #{tpu_custom_call.1} parent=1 // pred_fallthru
      _
    %189 = vsyncpa [#allocation3], 1
    %190 = vsyncpa [#allocation5], 1

</llo_original>
